<compile_context>
chip_gen: v5e
topology: v5e:2x2
jax: 0.10.0
libtpu: 0.0.40
codegen_flags: <defaults>
</compile_context>

<pallas_src>
import functools
import math

import jax
import jax.numpy as jnp
from jax import lax
from jax.experimental import pallas as pl
from jax.experimental.pallas import tpu as pltpu


# ---------------------------------------------------------------------------
# Kernel 1: embedding gather (manual DMA, ids scalar-prefetched) + scale + PE
# ---------------------------------------------------------------------------
def embed_pe_kernel(ids_ref, emb_hbm, pe_ref, out_ref, xbuf, sems, *,
                    scale, seq_len):
    b = pl.program_id(0)
    # Issue all row-gather DMAs for this batch element (they run concurrently),
    # then wait for each.  ids live in SMEM (scalar prefetch) -> cheap reads.
    for s in range(seq_len):
        tok = ids_ref[b * seq_len + s]
        pltpu.make_async_copy(emb_hbm.at[tok], xbuf.at[s], sems.at[s]).start()
    for s in range(seq_len):
        pltpu.make_async_copy(emb_hbm.at[0], xbuf.at[s], sems.at[s]).wait()
    # x = emb[ids] * sqrt(d_model) + pe[b]   (pe indexed by batch, see NOTE)
    out_ref[0] = xbuf[...] * scale + pe_ref[0]


def embed_with_pe(ids, emb, pe_b):
    B, S = ids.shape
    D = emb.shape[1]
    ids_flat = ids.reshape(B * S).astype(jnp.int32)
    pe3 = pe_b[:, None, :]                                    # [B, 1, D]
    grid_spec = pltpu.PrefetchScalarGridSpec(
        num_scalar_prefetch=1,
        grid=(B,),
        in_specs=[
            pl.BlockSpec(memory_space=pl.ANY),                # emb stays in HBM
            pl.BlockSpec((1, 1, D), lambda b, ids: (b, 0, 0)),
        ],
        out_specs=pl.BlockSpec((1, S, D), lambda b, ids: (b, 0, 0)),
        scratch_shapes=[pltpu.VMEM((S, D), jnp.float32),
                        pltpu.SemaphoreType.DMA((S,))],
    )
    return pl.pallas_call(
        functools.partial(embed_pe_kernel, scale=float(math.sqrt(D)), seq_len=S),
        grid_spec=grid_spec,
        out_shape=jax.ShapeDtypeStruct((B, S, D), jnp.float32),
        compiler_params=pltpu.CompilerParams(dimension_semantics=("arbitrary",)),
    )(ids_flat, emb, pe3)


# ---------------------------------------------------------------------------
# Kernel 2: full TransformerEncoder — grid (batch, layer)
# ---------------------------------------------------------------------------
def _layer_norm(x, gamma, beta, eps=1e-5):
    mean = jnp.mean(x, axis=-1, keepdims=True)
    xc = x - mean
    var = jnp.mean(xc * xc, axis=-1, keepdims=True)
    return xc * lax.rsqrt(var + eps) * gamma + beta


def encoder_kernel(x_ref, wqkv_ref, bqkv_ref, wo_ref, bo_ref,
                   g1_ref, be1_ref, w1_ref, b1_ref, w2_ref, b2_ref,
                   g2_ref, be2_ref, out_ref, xs_ref, *, nhead):
    l = pl.program_id(1)
    n_layers = pl.num_programs(1)

    @pl.when(l == 0)
    def _():
        xs_ref[...] = x_ref[0]                    # load activation carry

    x = xs_ref[...]                               # [S, D]
    seq, d_model = x.shape
    dh = d_model // nhead
    inv_sqrt_dh = 1.0 / math.sqrt(dh)

    # ---- multi-head self attention ----
    qkv = jnp.dot(x, wqkv_ref[0], preferred_element_type=jnp.float32) + bqkv_ref[0]
    q = qkv[:, :d_model]
    k = qkv[:, d_model:2 * d_model]
    v = qkv[:, 2 * d_model:]
    wo = wo_ref[0]                                # [D, D]

    attn = jnp.zeros((seq, d_model), jnp.float32)
    for h in range(nhead):
        sl = slice(h * dh, (h + 1) * dh)
        qh, kh, vh = q[:, sl], k[:, sl], v[:, sl]
        s = jnp.dot(qh, kh.T, preferred_element_type=jnp.float32) * inv_sqrt_dh
        s = s - jnp.max(s, axis=-1, keepdims=True)
        p = jnp.exp(s)
        p = p / jnp.sum(p, axis=-1, keepdims=True)
        oh = jnp.dot(p, vh, preferred_element_type=jnp.float32)
        # Fold this head's slice of the output projection in directly:
        # avoids a lane-wise concat of per-head outputs.
        attn = attn + jnp.dot(oh, wo[sl, :], preferred_element_type=jnp.float32)
    attn = attn + bo_ref[0]

    h1 = _layer_norm(x + attn, g1_ref[0], be1_ref[0])

    # ---- feed-forward ----
    ff = jnp.maximum(
        jnp.dot(h1, w1_ref[0], preferred_element_type=jnp.float32) + b1_ref[0], 0.0)
    ff = jnp.dot(ff, w2_ref[0], preferred_element_type=jnp.float32) + b2_ref[0]

    y = _layer_norm(h1 + ff, g2_ref[0], be2_ref[0])
    xs_ref[...] = y                               # carry to next layer

    @pl.when(l == n_layers - 1)
    def _():
        out_ref[0] = y


def transformer_encoder(x, stacked, nhead):
    B, S, D = x.shape
    L = stacked[0].shape[0]
    F = stacked[6].shape[-1]                      # dim_feedforward
    dh = D // nhead

    def wspec(a):
        return pl.BlockSpec((1, a.shape[1], a.shape[2]), lambda b, l: (l, 0, 0))

    in_specs = ([pl.BlockSpec((1, S, D), lambda b, l: (b, 0, 0))]
                + [wspec(a) for a in stacked])
    out_specs = pl.BlockSpec((1, S, D), lambda b, l: (b, 0, 0))

    cost = pl.CostEstimate(
        flops=int(2 * B * L * (S * D * 3 * D + 2 * nhead * S * S * dh
                               + S * D * D + 2 * S * D * F)),
        transcendentals=int(B * L * (nhead * S * S + 2 * S)),
        bytes_accessed=int(4 * (2 * B * S * D
                                + L * (4 * D * D + 2 * D * F + 7 * D + F))),
    )

    return pl.pallas_call(
        functools.partial(encoder_kernel, nhead=nhead),
        grid=(B, L),
        in_specs=in_specs,
        out_specs=out_specs,
        out_shape=jax.ShapeDtypeStruct((B, S, D), jnp.float32),
        scratch_shapes=[pltpu.VMEM((S, D), jnp.float32)],
        compiler_params=pltpu.CompilerParams(
            dimension_semantics=("parallel", "arbitrary")),
        cost_estimate=cost,
    )(x, *stacked)


# ---------------------------------------------------------------------------
# Kernel 3: classifier Linear(d_model, vocab)
# ---------------------------------------------------------------------------
def classifier_kernel(x_ref, wc_ref, bc_ref, out_ref):
    out_ref[0] = (jnp.dot(x_ref[0], wc_ref[...],
                          preferred_element_type=jnp.float32) + bc_ref[...])


def classifier(x, wc, bc):
    B, S, D = x.shape
    V = wc.shape[1]
    return pl.pallas_call(
        classifier_kernel,
        grid=(B,),
        in_specs=[pl.BlockSpec((1, S, D), lambda b: (b, 0, 0)),
                  pl.BlockSpec((D, V), lambda b: (0, 0)),
                  pl.BlockSpec((1, V), lambda b: (0, 0))],
        out_specs=pl.BlockSpec((1, S, V), lambda b: (b, 0, 0)),
        out_shape=jax.ShapeDtypeStruct((B, S, V), jnp.float32),
        compiler_params=pltpu.CompilerParams(dimension_semantics=("parallel",)),
    )(x, wc, bc)


# ---------------------------------------------------------------------------
# Full forward + pure-JAX reference
# ---------------------------------------------------------------------------
def transformer_forward(ids, emb, pe, layer_params, wc, bc, nhead):
    B, _ = ids.shape
    x = embed_with_pe(ids, emb, pe[:B])                       # [B, S, D]
    stacked = tuple(jnp.stack(ws) for ws in zip(*layer_params))
    x = transformer_encoder(x, stacked, nhead)                # [B, S, D]
    return classifier(x, wc, bc)                              # [B, S, V]


def ref_forward(ids, emb, pe, layer_params, wc, bc, nhead):
    """Pure-JAX reference matching TransformerModel.forward in eval mode."""
    B, S = ids.shape
    D = emb.shape[1]
    dh = D // nhead
    hp = jax.lax.Precision.HIGHEST
    x = emb[ids] * math.sqrt(D)
    x = x + pe[:B][:, None, :]          # literal module: pe indexed by batch dim
    for (wqkv, bqkv, wo, bo, g1, be1, w1, b1, w2, b2, g2, be2) in layer_params:
        qkv = jnp.einsum('bsd,de->bse', x, wqkv, precision=hp) + bqkv
        q, k, v = qkv[..., :D], qkv[..., D:2 * D], qkv[..., 2 * D:]
        qh = q.reshape(B, S, nhead, dh).transpose(0, 2, 1, 3)
        kh = k.reshape(B, S, nhead, dh).transpose(0, 2, 1, 3)
        vh = v.reshape(B, S, nhead, dh).transpose(0, 2, 1, 3)
        s = jnp.einsum('bhqd,bhkd->bhqk', qh, kh, precision=hp) / math.sqrt(dh)
        p = jax.nn.softmax(s, axis=-1)
        o = jnp.einsum('bhqk,bhkd->bhqd', p, vh, precision=hp)
        attn = o.transpose(0, 2, 1, 3).reshape(B, S, D)
        attn = jnp.einsum('bsd,de->bse', attn, wo, precision=hp) + bo
        x = _layer_norm(x + attn, g1, be1)
        ff = jax.nn.relu(jnp.einsum('bsd,df->bsf', x, w1, precision=hp) + b1)
        ff = jnp.einsum('bsf,fd->bsd', ff, w2, precision=hp) + b2
        x = _layer_norm(x + ff, g2, be2)
    return jnp.einsum('bsd,dv->bsv', x, wc, precision=hp) + bc


if __name__ == "__main__":
    # Small shapes consistent with the module (d_model / vocab kept lane-aligned).
    B, S = 2, 8            # batch, sequence length
    V, D = 128, 128        # vocab_size, d_model
    NHEAD = 4              # nhead
    FF = 256               # dim_feedforward
    NLAYERS = 2            # num_layers (default is 6; small for the demo)
    MAX_LEN = 64

    key = jax.random.PRNGKey(0)
    keys = jax.random.split(key, 2 + 12 * NLAYERS + 2)
    kit = iter(keys)

    ids = jax.random.randint(next(kit), (B, S), 0, V, dtype=jnp.int32)
    emb = jax.random.normal(next(kit), (V, D), jnp.float32) * 0.1

    # Sinusoidal positional-encoding buffer (same formula as the torch module).
    pos = jnp.arange(MAX_LEN, dtype=jnp.float32)[:, None]
    div = jnp.exp(jnp.arange(0, D, 2, dtype=jnp.float32) * (-math.log(10000.0) / D))
    pe = jnp.zeros((MAX_LEN, D), jnp.float32)
    pe = pe.at[:, 0::2].set(jnp.sin(pos * div))
    pe = pe.at[:, 1::2].set(jnp.cos(pos * div))

    layer_params = []
    for _ in range(NLAYERS):
        wqkv = jax.random.normal(next(kit), (D, 3 * D), jnp.float32) * 0.05
        bqkv = jax.random.normal(next(kit), (1, 3 * D), jnp.float32) * 0.02
        wo   = jax.random.normal(next(kit), (D, D), jnp.float32) * 0.05
        bo   = jax.random.normal(next(kit), (1, D), jnp.float32) * 0.02
        g1   = 1.0 + 0.1 * jax.random.normal(next(kit), (1, D), jnp.float32)
        be1  = 0.05 * jax.random.normal(next(kit), (1, D), jnp.float32)
        w1   = jax.random.normal(next(kit), (D, FF), jnp.float32) * 0.05
        b1   = 0.02 * jax.random.normal(next(kit), (1, FF), jnp.float32)
        w2   = jax.random.normal(next(kit), (FF, D), jnp.float32) * 0.05
        b2   = 0.02 * jax.random.normal(next(kit), (1, D), jnp.float32)
        g2   = 1.0 + 0.1 * jax.random.normal(next(kit), (1, D), jnp.float32)
        be2  = 0.05 * jax.random.normal(next(kit), (1, D), jnp.float32)
        layer_params.append((wqkv, bqkv, wo, bo, g1, be1,
                             w1, b1, w2, b2, g2, be2))

    wc = jax.random.normal(next(kit), (D, V), jnp.float32) * 0.05
    bc = 0.02 * jax.random.normal(next(kit), (1, V), jnp.float32)

    out = transformer_forward(ids, emb, pe, layer_params, wc, bc, NHEAD)
    out = jax.block_until_ready(out)

    ref = ref_forward(ids, emb, pe, layer_params, wc, bc, NHEAD)
    assert out.shape == (B, S, V)
    err = float(jnp.max(jnp.abs(out - ref)))
    assert jnp.allclose(out, ref, atol=2e-3, rtol=2e-3), f"mismatch vs reference: {err}"

    print("KERNEL_OK")
</pallas_src>

<mosaic_0001>
module attributes {stable_mosaic.version = 11 : i64} {
  func.func @embed_pe_kernel(%arg0: i32, %arg1: memref<16xi32, #tpu.memory_space<smem>>, %arg2: memref<128x128xf32, #tpu.memory_space<any>>, %arg3: memref<1x1x128xf32, #tpu.memory_space<vmem>>, %arg4: memref<1x8x128xf32, #tpu.memory_space<vmem>>, %arg5: memref<8x128xf32, #tpu.memory_space<vmem>>, %arg6: memref<8x!tpu.dma_semaphore, #tpu.memory_space<semaphore_mem>>) attributes {dimension_semantics = [#tpu.dimension_semantics<arbitrary>], iteration_bounds = array<i64: 2>, scalar_prefetch = 1 : i64, scratch_operands = 2 : i64, tpu.core_type = #tpu.core_type<tc>, window_params = [{}, {transform_indices = @transform_1, window_bounds = array<i64: 1, 1, 128>}, {transform_indices = @transform_2, window_bounds = array<i64: 1, 8, 128>}]} {
    %c8_i32 = arith.constant 8 : i32
    %0 = arith.muli %arg0, %c8_i32 : i32
    %c0_i32 = arith.constant 0 : i32
    %1 = arith.addi %0, %c0_i32 : i32
    %2 = arith.index_cast %1 : i32 to index
    %3 = memref.load %arg1[%2] : memref<16xi32, #tpu.memory_space<smem>>
    %c0_i32_0 = arith.constant 0 : i32
    %c0_i32_1 = arith.constant 0 : i32
    %c0_i32_2 = arith.constant 0 : i32
    %4 = tpu.memref_slice %arg2[%3, %c0_i32_2] : memref<128x128xf32, #tpu.memory_space<any>> -> memref<1x128xf32, #tpu.memory_space<any>>
    %5 = tpu.memref_squeeze %4 : memref<1x128xf32, #tpu.memory_space<any>> -> memref<128xf32, #tpu.memory_space<any>>
    %c0_i32_3 = arith.constant 0 : i32
    %6 = tpu.memref_slice %arg5[%c0_i32_0, %c0_i32_3] : memref<8x128xf32, #tpu.memory_space<vmem>> -> memref<1x128xf32, #tpu.memory_space<vmem>>
    %7 = tpu.memref_squeeze %6 : memref<1x128xf32, #tpu.memory_space<vmem>> -> memref<128xf32, #tpu.memory_space<vmem>>
    %8 = tpu.memref_slice %arg6[%c0_i32_1] : memref<8x!tpu.dma_semaphore, #tpu.memory_space<semaphore_mem>> -> memref<1x!tpu.dma_semaphore, #tpu.memory_space<semaphore_mem>>
    %9 = tpu.memref_squeeze %8 : memref<1x!tpu.dma_semaphore, #tpu.memory_space<semaphore_mem>> -> memref<!tpu.dma_semaphore, #tpu.memory_space<semaphore_mem>>
    tpu.enqueue_dma source(%5 : memref<128xf32, #tpu.memory_space<any>>) target(%7 : memref<128xf32, #tpu.memory_space<vmem>>) target_semaphore(%9 : memref<!tpu.dma_semaphore, #tpu.memory_space<semaphore_mem>>)
    %c8_i32_4 = arith.constant 8 : i32
    %10 = arith.muli %arg0, %c8_i32_4 : i32
    %c1_i32 = arith.constant 1 : i32
    %11 = arith.addi %10, %c1_i32 : i32
    %12 = arith.index_cast %11 : i32 to index
    %13 = memref.load %arg1[%12] : memref<16xi32, #tpu.memory_space<smem>>
    %c1_i32_5 = arith.constant 1 : i32
    %c1_i32_6 = arith.constant 1 : i32
    %c0_i32_7 = arith.constant 0 : i32
    %14 = tpu.memref_slice %arg2[%13, %c0_i32_7] : memref<128x128xf32, #tpu.memory_space<any>> -> memref<1x128xf32, #tpu.memory_space<any>>
    %15 = tpu.memref_squeeze %14 : memref<1x128xf32, #tpu.memory_space<any>> -> memref<128xf32, #tpu.memory_space<any>>
    %c0_i32_8 = arith.constant 0 : i32
    %16 = tpu.memref_slice %arg5[%c1_i32_5, %c0_i32_8] : memref<8x128xf32, #tpu.memory_space<vmem>> -> memref<1x128xf32, #tpu.memory_space<vmem>>
    %17 = tpu.memref_squeeze %16 : memref<1x128xf32, #tpu.memory_space<vmem>> -> memref<128xf32, #tpu.memory_space<vmem>>
    %18 = tpu.memref_slice %arg6[%c1_i32_6] : memref<8x!tpu.dma_semaphore, #tpu.memory_space<semaphore_mem>> -> memref<1x!tpu.dma_semaphore, #tpu.memory_space<semaphore_mem>>
    %19 = tpu.memref_squeeze %18 : memref<1x!tpu.dma_semaphore, #tpu.memory_space<semaphore_mem>> -> memref<!tpu.dma_semaphore, #tpu.memory_space<semaphore_mem>>
    tpu.enqueue_dma source(%15 : memref<128xf32, #tpu.memory_space<any>>) target(%17 : memref<128xf32, #tpu.memory_space<vmem>>) target_semaphore(%19 : memref<!tpu.dma_semaphore, #tpu.memory_space<semaphore_mem>>)
    %c8_i32_9 = arith.constant 8 : i32
    %20 = arith.muli %arg0, %c8_i32_9 : i32
    %c2_i32 = arith.constant 2 : i32
    %21 = arith.addi %20, %c2_i32 : i32
    %22 = arith.index_cast %21 : i32 to index
    %23 = memref.load %arg1[%22] : memref<16xi32, #tpu.memory_space<smem>>
    %c2_i32_10 = arith.constant 2 : i32
    %c2_i32_11 = arith.constant 2 : i32
    %c0_i32_12 = arith.constant 0 : i32
    %24 = tpu.memref_slice %arg2[%23, %c0_i32_12] : memref<128x128xf32, #tpu.memory_space<any>> -> memref<1x128xf32, #tpu.memory_space<any>>
    %25 = tpu.memref_squeeze %24 : memref<1x128xf32, #tpu.memory_space<any>> -> memref<128xf32, #tpu.memory_space<any>>
    %c0_i32_13 = arith.constant 0 : i32
    %26 = tpu.memref_slice %arg5[%c2_i32_10, %c0_i32_13] : memref<8x128xf32, #tpu.memory_space<vmem>> -> memref<1x128xf32, #tpu.memory_space<vmem>>
    %27 = tpu.memref_squeeze %26 : memref<1x128xf32, #tpu.memory_space<vmem>> -> memref<128xf32, #tpu.memory_space<vmem>>
    %28 = tpu.memref_slice %arg6[%c2_i32_11] : memref<8x!tpu.dma_semaphore, #tpu.memory_space<semaphore_mem>> -> memref<1x!tpu.dma_semaphore, #tpu.memory_space<semaphore_mem>>
    %29 = tpu.memref_squeeze %28 : memref<1x!tpu.dma_semaphore, #tpu.memory_space<semaphore_mem>> -> memref<!tpu.dma_semaphore, #tpu.memory_space<semaphore_mem>>
    tpu.enqueue_dma source(%25 : memref<128xf32, #tpu.memory_space<any>>) target(%27 : memref<128xf32, #tpu.memory_space<vmem>>) target_semaphore(%29 : memref<!tpu.dma_semaphore, #tpu.memory_space<semaphore_mem>>)
    %c8_i32_14 = arith.constant 8 : i32
    %30 = arith.muli %arg0, %c8_i32_14 : i32
    %c3_i32 = arith.constant 3 : i32
    %31 = arith.addi %30, %c3_i32 : i32
    %32 = arith.index_cast %31 : i32 to index
    %33 = memref.load %arg1[%32] : memref<16xi32, #tpu.memory_space<smem>>
    %c3_i32_15 = arith.constant 3 : i32
    %c3_i32_16 = arith.constant 3 : i32
    %c0_i32_17 = arith.constant 0 : i32
    %34 = tpu.memref_slice %arg2[%33, %c0_i32_17] : memref<128x128xf32, #tpu.memory_space<any>> -> memref<1x128xf32, #tpu.memory_space<any>>
    %35 = tpu.memref_squeeze %34 : memref<1x128xf32, #tpu.memory_space<any>> -> memref<128xf32, #tpu.memory_space<any>>
    %c0_i32_18 = arith.constant 0 : i32
    %36 = tpu.memref_slice %arg5[%c3_i32_15, %c0_i32_18] : memref<8x128xf32, #tpu.memory_space<vmem>> -> memref<1x128xf32, #tpu.memory_space<vmem>>
    %37 = tpu.memref_squeeze %36 : memref<1x128xf32, #tpu.memory_space<vmem>> -> memref<128xf32, #tpu.memory_space<vmem>>
    %38 = tpu.memref_slice %arg6[%c3_i32_16] : memref<8x!tpu.dma_semaphore, #tpu.memory_space<semaphore_mem>> -> memref<1x!tpu.dma_semaphore, #tpu.memory_space<semaphore_mem>>
    %39 = tpu.memref_squeeze %38 : memref<1x!tpu.dma_semaphore, #tpu.memory_space<semaphore_mem>> -> memref<!tpu.dma_semaphore, #tpu.memory_space<semaphore_mem>>
    tpu.enqueue_dma source(%35 : memref<128xf32, #tpu.memory_space<any>>) target(%37 : memref<128xf32, #tpu.memory_space<vmem>>) target_semaphore(%39 : memref<!tpu.dma_semaphore, #tpu.memory_space<semaphore_mem>>)
    %c8_i32_19 = arith.constant 8 : i32
    %40 = arith.muli %arg0, %c8_i32_19 : i32
    %c4_i32 = arith.constant 4 : i32
    %41 = arith.addi %40, %c4_i32 : i32
    %42 = arith.index_cast %41 : i32 to index
    %43 = memref.load %arg1[%42] : memref<16xi32, #tpu.memory_space<smem>>
    %c4_i32_20 = arith.constant 4 : i32
    %c4_i32_21 = arith.constant 4 : i32
    %c0_i32_22 = arith.constant 0 : i32
    %44 = tpu.memref_slice %arg2[%43, %c0_i32_22] : memref<128x128xf32, #tpu.memory_space<any>> -> memref<1x128xf32, #tpu.memory_space<any>>
    %45 = tpu.memref_squeeze %44 : memref<1x128xf32, #tpu.memory_space<any>> -> memref<128xf32, #tpu.memory_space<any>>
    %c0_i32_23 = arith.constant 0 : i32
    %46 = tpu.memref_slice %arg5[%c4_i32_20, %c0_i32_23] : memref<8x128xf32, #tpu.memory_space<vmem>> -> memref<1x128xf32, #tpu.memory_space<vmem>>
    %47 = tpu.memref_squeeze %46 : memref<1x128xf32, #tpu.memory_space<vmem>> -> memref<128xf32, #tpu.memory_space<vmem>>
    %48 = tpu.memref_slice %arg6[%c4_i32_21] : memref<8x!tpu.dma_semaphore, #tpu.memory_space<semaphore_mem>> -> memref<1x!tpu.dma_semaphore, #tpu.memory_space<semaphore_mem>>
    %49 = tpu.memref_squeeze %48 : memref<1x!tpu.dma_semaphore, #tpu.memory_space<semaphore_mem>> -> memref<!tpu.dma_semaphore, #tpu.memory_space<semaphore_mem>>
    tpu.enqueue_dma source(%45 : memref<128xf32, #tpu.memory_space<any>>) target(%47 : memref<128xf32, #tpu.memory_space<vmem>>) target_semaphore(%49 : memref<!tpu.dma_semaphore, #tpu.memory_space<semaphore_mem>>)
    %c8_i32_24 = arith.constant 8 : i32
    %50 = arith.muli %arg0, %c8_i32_24 : i32
    %c5_i32 = arith.constant 5 : i32
    %51 = arith.addi %50, %c5_i32 : i32
    %52 = arith.index_cast %51 : i32 to index
    %53 = memref.load %arg1[%52] : memref<16xi32, #tpu.memory_space<smem>>
    %c5_i32_25 = arith.constant 5 : i32
    %c5_i32_26 = arith.constant 5 : i32
    %c0_i32_27 = arith.constant 0 : i32
    %54 = tpu.memref_slice %arg2[%53, %c0_i32_27] : memref<128x128xf32, #tpu.memory_space<any>> -> memref<1x128xf32, #tpu.memory_space<any>>
    %55 = tpu.memref_squeeze %54 : memref<1x128xf32, #tpu.memory_space<any>> -> memref<128xf32, #tpu.memory_space<any>>
    %c0_i32_28 = arith.constant 0 : i32
    %56 = tpu.memref_slice %arg5[%c5_i32_25, %c0_i32_28] : memref<8x128xf32, #tpu.memory_space<vmem>> -> memref<1x128xf32, #tpu.memory_space<vmem>>
    %57 = tpu.memref_squeeze %56 : memref<1x128xf32, #tpu.memory_space<vmem>> -> memref<128xf32, #tpu.memory_space<vmem>>
    %58 = tpu.memref_slice %arg6[%c5_i32_26] : memref<8x!tpu.dma_semaphore, #tpu.memory_space<semaphore_mem>> -> memref<1x!tpu.dma_semaphore, #tpu.memory_space<semaphore_mem>>
    %59 = tpu.memref_squeeze %58 : memref<1x!tpu.dma_semaphore, #tpu.memory_space<semaphore_mem>> -> memref<!tpu.dma_semaphore, #tpu.memory_space<semaphore_mem>>
    tpu.enqueue_dma source(%55 : memref<128xf32, #tpu.memory_space<any>>) target(%57 : memref<128xf32, #tpu.memory_space<vmem>>) target_semaphore(%59 : memref<!tpu.dma_semaphore, #tpu.memory_space<semaphore_mem>>)
    %c8_i32_29 = arith.constant 8 : i32
    %60 = arith.muli %arg0, %c8_i32_29 : i32
    %c6_i32 = arith.constant 6 : i32
    %61 = arith.addi %60, %c6_i32 : i32
    %62 = arith.index_cast %61 : i32 to index
    %63 = memref.load %arg1[%62] : memref<16xi32, #tpu.memory_space<smem>>
    %c6_i32_30 = arith.constant 6 : i32
    %c6_i32_31 = arith.constant 6 : i32
    %c0_i32_32 = arith.constant 0 : i32
    %64 = tpu.memref_slice %arg2[%63, %c0_i32_32] : memref<128x128xf32, #tpu.memory_space<any>> -> memref<1x128xf32, #tpu.memory_space<any>>
    %65 = tpu.memref_squeeze %64 : memref<1x128xf32, #tpu.memory_space<any>> -> memref<128xf32, #tpu.memory_space<any>>
    %c0_i32_33 = arith.constant 0 : i32
    %66 = tpu.memref_slice %arg5[%c6_i32_30, %c0_i32_33] : memref<8x128xf32, #tpu.memory_space<vmem>> -> memref<1x128xf32, #tpu.memory_space<vmem>>
    %67 = tpu.memref_squeeze %66 : memref<1x128xf32, #tpu.memory_space<vmem>> -> memref<128xf32, #tpu.memory_space<vmem>>
    %68 = tpu.memref_slice %arg6[%c6_i32_31] : memref<8x!tpu.dma_semaphore, #tpu.memory_space<semaphore_mem>> -> memref<1x!tpu.dma_semaphore, #tpu.memory_space<semaphore_mem>>
    %69 = tpu.memref_squeeze %68 : memref<1x!tpu.dma_semaphore, #tpu.memory_space<semaphore_mem>> -> memref<!tpu.dma_semaphore, #tpu.memory_space<semaphore_mem>>
    tpu.enqueue_dma source(%65 : memref<128xf32, #tpu.memory_space<any>>) target(%67 : memref<128xf32, #tpu.memory_space<vmem>>) target_semaphore(%69 : memref<!tpu.dma_semaphore, #tpu.memory_space<semaphore_mem>>)
    %c8_i32_34 = arith.constant 8 : i32
    %70 = arith.muli %arg0, %c8_i32_34 : i32
    %c7_i32 = arith.constant 7 : i32
    %71 = arith.addi %70, %c7_i32 : i32
    %72 = arith.index_cast %71 : i32 to index
    %73 = memref.load %arg1[%72] : memref<16xi32, #tpu.memory_space<smem>>
    %c7_i32_35 = arith.constant 7 : i32
    %c7_i32_36 = arith.constant 7 : i32
    %c0_i32_37 = arith.constant 0 : i32
    %74 = tpu.memref_slice %arg2[%73, %c0_i32_37] : memref<128x128xf32, #tpu.memory_space<any>> -> memref<1x128xf32, #tpu.memory_space<any>>
    %75 = tpu.memref_squeeze %74 : memref<1x128xf32, #tpu.memory_space<any>> -> memref<128xf32, #tpu.memory_space<any>>
    %c0_i32_38 = arith.constant 0 : i32
    %76 = tpu.memref_slice %arg5[%c7_i32_35, %c0_i32_38] : memref<8x128xf32, #tpu.memory_space<vmem>> -> memref<1x128xf32, #tpu.memory_space<vmem>>
    %77 = tpu.memref_squeeze %76 : memref<1x128xf32, #tpu.memory_space<vmem>> -> memref<128xf32, #tpu.memory_space<vmem>>
    %78 = tpu.memref_slice %arg6[%c7_i32_36] : memref<8x!tpu.dma_semaphore, #tpu.memory_space<semaphore_mem>> -> memref<1x!tpu.dma_semaphore, #tpu.memory_space<semaphore_mem>>
    %79 = tpu.memref_squeeze %78 : memref<1x!tpu.dma_semaphore, #tpu.memory_space<semaphore_mem>> -> memref<!tpu.dma_semaphore, #tpu.memory_space<semaphore_mem>>
    tpu.enqueue_dma source(%75 : memref<128xf32, #tpu.memory_space<any>>) target(%77 : memref<128xf32, #tpu.memory_space<vmem>>) target_semaphore(%79 : memref<!tpu.dma_semaphore, #tpu.memory_space<semaphore_mem>>)
    %c0_i32_39 = arith.constant 0 : i32
    %c0_i32_40 = arith.constant 0 : i32
    %c0_i32_41 = arith.constant 0 : i32
    %c0_i32_42 = arith.constant 0 : i32
    %80 = tpu.memref_slice %arg2[%c0_i32_39, %c0_i32_42] : memref<128x128xf32, #tpu.memory_space<any>> -> memref<1x128xf32, #tpu.memory_space<any>>
    %81 = tpu.memref_squeeze %80 : memref<1x128xf32, #tpu.memory_space<any>> -> memref<128xf32, #tpu.memory_space<any>>
    %c0_i32_43 = arith.constant 0 : i32
    %82 = tpu.memref_slice %arg5[%c0_i32_40, %c0_i32_43] : memref<8x128xf32, #tpu.memory_space<vmem>> -> memref<1x128xf32, #tpu.memory_space<vmem>>
    %83 = tpu.memref_squeeze %82 : memref<1x128xf32, #tpu.memory_space<vmem>> -> memref<128xf32, #tpu.memory_space<vmem>>
    %84 = tpu.memref_slice %arg6[%c0_i32_41] : memref<8x!tpu.dma_semaphore, #tpu.memory_space<semaphore_mem>> -> memref<1x!tpu.dma_semaphore, #tpu.memory_space<semaphore_mem>>
    %85 = tpu.memref_squeeze %84 : memref<1x!tpu.dma_semaphore, #tpu.memory_space<semaphore_mem>> -> memref<!tpu.dma_semaphore, #tpu.memory_space<semaphore_mem>>
    tpu.wait_dma2 semaphore(%85 : memref<!tpu.dma_semaphore, #tpu.memory_space<semaphore_mem>>) src(%81 : memref<128xf32, #tpu.memory_space<any>>) dst(%83 : memref<128xf32, #tpu.memory_space<vmem>>)
    %c0_i32_44 = arith.constant 0 : i32
    %c1_i32_45 = arith.constant 1 : i32
    %c1_i32_46 = arith.constant 1 : i32
    %c0_i32_47 = arith.constant 0 : i32
    %86 = tpu.memref_slice %arg2[%c0_i32_44, %c0_i32_47] : memref<128x128xf32, #tpu.memory_space<any>> -> memref<1x128xf32, #tpu.memory_space<any>>
    %87 = tpu.memref_squeeze %86 : memref<1x128xf32, #tpu.memory_space<any>> -> memref<128xf32, #tpu.memory_space<any>>
    %c0_i32_48 = arith.constant 0 : i32
    %88 = tpu.memref_slice %arg5[%c1_i32_45, %c0_i32_48] : memref<8x128xf32, #tpu.memory_space<vmem>> -> memref<1x128xf32, #tpu.memory_space<vmem>>
    %89 = tpu.memref_squeeze %88 : memref<1x128xf32, #tpu.memory_space<vmem>> -> memref<128xf32, #tpu.memory_space<vmem>>
    %90 = tpu.memref_slice %arg6[%c1_i32_46] : memref<8x!tpu.dma_semaphore, #tpu.memory_space<semaphore_mem>> -> memref<1x!tpu.dma_semaphore, #tpu.memory_space<semaphore_mem>>
    %91 = tpu.memref_squeeze %90 : memref<1x!tpu.dma_semaphore, #tpu.memory_space<semaphore_mem>> -> memref<!tpu.dma_semaphore, #tpu.memory_space<semaphore_mem>>
    tpu.wait_dma2 semaphore(%91 : memref<!tpu.dma_semaphore, #tpu.memory_space<semaphore_mem>>) src(%87 : memref<128xf32, #tpu.memory_space<any>>) dst(%89 : memref<128xf32, #tpu.memory_space<vmem>>)
    %c0_i32_49 = arith.constant 0 : i32
    %c2_i32_50 = arith.constant 2 : i32
    %c2_i32_51 = arith.constant 2 : i32
    %c0_i32_52 = arith.constant 0 : i32
    %92 = tpu.memref_slice %arg2[%c0_i32_49, %c0_i32_52] : memref<128x128xf32, #tpu.memory_space<any>> -> memref<1x128xf32, #tpu.memory_space<any>>
    %93 = tpu.memref_squeeze %92 : memref<1x128xf32, #tpu.memory_space<any>> -> memref<128xf32, #tpu.memory_space<any>>
    %c0_i32_53 = arith.constant 0 : i32
    %94 = tpu.memref_slice %arg5[%c2_i32_50, %c0_i32_53] : memref<8x128xf32, #tpu.memory_space<vmem>> -> memref<1x128xf32, #tpu.memory_space<vmem>>
    %95 = tpu.memref_squeeze %94 : memref<1x128xf32, #tpu.memory_space<vmem>> -> memref<128xf32, #tpu.memory_space<vmem>>
    %96 = tpu.memref_slice %arg6[%c2_i32_51] : memref<8x!tpu.dma_semaphore, #tpu.memory_space<semaphore_mem>> -> memref<1x!tpu.dma_semaphore, #tpu.memory_space<semaphore_mem>>
    %97 = tpu.memref_squeeze %96 : memref<1x!tpu.dma_semaphore, #tpu.memory_space<semaphore_mem>> -> memref<!tpu.dma_semaphore, #tpu.memory_space<semaphore_mem>>
    tpu.wait_dma2 semaphore(%97 : memref<!tpu.dma_semaphore, #tpu.memory_space<semaphore_mem>>) src(%93 : memref<128xf32, #tpu.memory_space<any>>) dst(%95 : memref<128xf32, #tpu.memory_space<vmem>>)
    %c0_i32_54 = arith.constant 0 : i32
    %c3_i32_55 = arith.constant 3 : i32
    %c3_i32_56 = arith.constant 3 : i32
    %c0_i32_57 = arith.constant 0 : i32
    %98 = tpu.memref_slice %arg2[%c0_i32_54, %c0_i32_57] : memref<128x128xf32, #tpu.memory_space<any>> -> memref<1x128xf32, #tpu.memory_space<any>>
    %99 = tpu.memref_squeeze %98 : memref<1x128xf32, #tpu.memory_space<any>> -> memref<128xf32, #tpu.memory_space<any>>
    %c0_i32_58 = arith.constant 0 : i32
    %100 = tpu.memref_slice %arg5[%c3_i32_55, %c0_i32_58] : memref<8x128xf32, #tpu.memory_space<vmem>> -> memref<1x128xf32, #tpu.memory_space<vmem>>
    %101 = tpu.memref_squeeze %100 : memref<1x128xf32, #tpu.memory_space<vmem>> -> memref<128xf32, #tpu.memory_space<vmem>>
    %102 = tpu.memref_slice %arg6[%c3_i32_56] : memref<8x!tpu.dma_semaphore, #tpu.memory_space<semaphore_mem>> -> memref<1x!tpu.dma_semaphore, #tpu.memory_space<semaphore_mem>>
    %103 = tpu.memref_squeeze %102 : memref<1x!tpu.dma_semaphore, #tpu.memory_space<semaphore_mem>> -> memref<!tpu.dma_semaphore, #tpu.memory_space<semaphore_mem>>
    tpu.wait_dma2 semaphore(%103 : memref<!tpu.dma_semaphore, #tpu.memory_space<semaphore_mem>>) src(%99 : memref<128xf32, #tpu.memory_space<any>>) dst(%101 : memref<128xf32, #tpu.memory_space<vmem>>)
    %c0_i32_59 = arith.constant 0 : i32
    %c4_i32_60 = arith.constant 4 : i32
    %c4_i32_61 = arith.constant 4 : i32
    %c0_i32_62 = arith.constant 0 : i32
    %104 = tpu.memref_slice %arg2[%c0_i32_59, %c0_i32_62] : memref<128x128xf32, #tpu.memory_space<any>> -> memref<1x128xf32, #tpu.memory_space<any>>
    %105 = tpu.memref_squeeze %104 : memref<1x128xf32, #tpu.memory_space<any>> -> memref<128xf32, #tpu.memory_space<any>>
    %c0_i32_63 = arith.constant 0 : i32
    %106 = tpu.memref_slice %arg5[%c4_i32_60, %c0_i32_63] : memref<8x128xf32, #tpu.memory_space<vmem>> -> memref<1x128xf32, #tpu.memory_space<vmem>>
    %107 = tpu.memref_squeeze %106 : memref<1x128xf32, #tpu.memory_space<vmem>> -> memref<128xf32, #tpu.memory_space<vmem>>
    %108 = tpu.memref_slice %arg6[%c4_i32_61] : memref<8x!tpu.dma_semaphore, #tpu.memory_space<semaphore_mem>> -> memref<1x!tpu.dma_semaphore, #tpu.memory_space<semaphore_mem>>
    %109 = tpu.memref_squeeze %108 : memref<1x!tpu.dma_semaphore, #tpu.memory_space<semaphore_mem>> -> memref<!tpu.dma_semaphore, #tpu.memory_space<semaphore_mem>>
    tpu.wait_dma2 semaphore(%109 : memref<!tpu.dma_semaphore, #tpu.memory_space<semaphore_mem>>) src(%105 : memref<128xf32, #tpu.memory_space<any>>) dst(%107 : memref<128xf32, #tpu.memory_space<vmem>>)
    %c0_i32_64 = arith.constant 0 : i32
    %c5_i32_65 = arith.constant 5 : i32
    %c5_i32_66 = arith.constant 5 : i32
    %c0_i32_67 = arith.constant 0 : i32
    %110 = tpu.memref_slice %arg2[%c0_i32_64, %c0_i32_67] : memref<128x128xf32, #tpu.memory_space<any>> -> memref<1x128xf32, #tpu.memory_space<any>>
    %111 = tpu.memref_squeeze %110 : memref<1x128xf32, #tpu.memory_space<any>> -> memref<128xf32, #tpu.memory_space<any>>
    %c0_i32_68 = arith.constant 0 : i32
    %112 = tpu.memref_slice %arg5[%c5_i32_65, %c0_i32_68] : memref<8x128xf32, #tpu.memory_space<vmem>> -> memref<1x128xf32, #tpu.memory_space<vmem>>
    %113 = tpu.memref_squeeze %112 : memref<1x128xf32, #tpu.memory_space<vmem>> -> memref<128xf32, #tpu.memory_space<vmem>>
    %114 = tpu.memref_slice %arg6[%c5_i32_66] : memref<8x!tpu.dma_semaphore, #tpu.memory_space<semaphore_mem>> -> memref<1x!tpu.dma_semaphore, #tpu.memory_space<semaphore_mem>>
    %115 = tpu.memref_squeeze %114 : memref<1x!tpu.dma_semaphore, #tpu.memory_space<semaphore_mem>> -> memref<!tpu.dma_semaphore, #tpu.memory_space<semaphore_mem>>
    tpu.wait_dma2 semaphore(%115 : memref<!tpu.dma_semaphore, #tpu.memory_space<semaphore_mem>>) src(%111 : memref<128xf32, #tpu.memory_space<any>>) dst(%113 : memref<128xf32, #tpu.memory_space<vmem>>)
    %c0_i32_69 = arith.constant 0 : i32
    %c6_i32_70 = arith.constant 6 : i32
    %c6_i32_71 = arith.constant 6 : i32
    %c0_i32_72 = arith.constant 0 : i32
    %116 = tpu.memref_slice %arg2[%c0_i32_69, %c0_i32_72] : memref<128x128xf32, #tpu.memory_space<any>> -> memref<1x128xf32, #tpu.memory_space<any>>
    %117 = tpu.memref_squeeze %116 : memref<1x128xf32, #tpu.memory_space<any>> -> memref<128xf32, #tpu.memory_space<any>>
    %c0_i32_73 = arith.constant 0 : i32
    %118 = tpu.memref_slice %arg5[%c6_i32_70, %c0_i32_73] : memref<8x128xf32, #tpu.memory_space<vmem>> -> memref<1x128xf32, #tpu.memory_space<vmem>>
    %119 = tpu.memref_squeeze %118 : memref<1x128xf32, #tpu.memory_space<vmem>> -> memref<128xf32, #tpu.memory_space<vmem>>
    %120 = tpu.memref_slice %arg6[%c6_i32_71] : memref<8x!tpu.dma_semaphore, #tpu.memory_space<semaphore_mem>> -> memref<1x!tpu.dma_semaphore, #tpu.memory_space<semaphore_mem>>
    %121 = tpu.memref_squeeze %120 : memref<1x!tpu.dma_semaphore, #tpu.memory_space<semaphore_mem>> -> memref<!tpu.dma_semaphore, #tpu.memory_space<semaphore_mem>>
    tpu.wait_dma2 semaphore(%121 : memref<!tpu.dma_semaphore, #tpu.memory_space<semaphore_mem>>) src(%117 : memref<128xf32, #tpu.memory_space<any>>) dst(%119 : memref<128xf32, #tpu.memory_space<vmem>>)
    %c0_i32_74 = arith.constant 0 : i32
    %c7_i32_75 = arith.constant 7 : i32
    %c7_i32_76 = arith.constant 7 : i32
    %c0_i32_77 = arith.constant 0 : i32
    %122 = tpu.memref_slice %arg2[%c0_i32_74, %c0_i32_77] : memref<128x128xf32, #tpu.memory_space<any>> -> memref<1x128xf32, #tpu.memory_space<any>>
    %123 = tpu.memref_squeeze %122 : memref<1x128xf32, #tpu.memory_space<any>> -> memref<128xf32, #tpu.memory_space<any>>
    %c0_i32_78 = arith.constant 0 : i32
    %124 = tpu.memref_slice %arg5[%c7_i32_75, %c0_i32_78] : memref<8x128xf32, #tpu.memory_space<vmem>> -> memref<1x128xf32, #tpu.memory_space<vmem>>
    %125 = tpu.memref_squeeze %124 : memref<1x128xf32, #tpu.memory_space<vmem>> -> memref<128xf32, #tpu.memory_space<vmem>>
    %126 = tpu.memref_slice %arg6[%c7_i32_76] : memref<8x!tpu.dma_semaphore, #tpu.memory_space<semaphore_mem>> -> memref<1x!tpu.dma_semaphore, #tpu.memory_space<semaphore_mem>>
    %127 = tpu.memref_squeeze %126 : memref<1x!tpu.dma_semaphore, #tpu.memory_space<semaphore_mem>> -> memref<!tpu.dma_semaphore, #tpu.memory_space<semaphore_mem>>
    tpu.wait_dma2 semaphore(%127 : memref<!tpu.dma_semaphore, #tpu.memory_space<semaphore_mem>>) src(%123 : memref<128xf32, #tpu.memory_space<any>>) dst(%125 : memref<128xf32, #tpu.memory_space<vmem>>)
    %c0 = arith.constant 0 : index
    %c0_79 = arith.constant 0 : index
    %128 = vector.load %arg5[%c0, %c0_79] : memref<8x128xf32, #tpu.memory_space<vmem>>, vector<8x128xf32>
    %cst = arith.constant 11.3137083 : f32
    %129 = vector.broadcast %cst : f32 to vector<8x128xf32>
    %130 = arith.mulf %128, %129 : vector<8x128xf32>
    %c0_80 = arith.constant 0 : index
    %c0_81 = arith.constant 0 : index
    %c0_82 = arith.constant 0 : index
    %131 = vector.load %arg3[%c0_80, %c0_81, %c0_82] : memref<1x1x128xf32, #tpu.memory_space<vmem>>, vector<1x1x128xf32>
    %132 = vector.shape_cast %131 : vector<1x1x128xf32> to vector<1x128xf32>
    %133 = vector.broadcast %132 : vector<1x128xf32> to vector<8x128xf32>
    %134 = arith.addf %130, %133 : vector<8x128xf32>
    %c0_83 = arith.constant 0 : index
    %c0_84 = arith.constant 0 : index
    %c0_85 = arith.constant 0 : index
    %135 = vector.load %arg4[%c0_83, %c0_84, %c0_85] : memref<1x8x128xf32, #tpu.memory_space<vmem>>, vector<1x8x128xf32>
    %136 = vector.shape_cast %135 : vector<1x8x128xf32> to vector<8x128xf32>
    %137 = vector.shape_cast %134 : vector<8x128xf32> to vector<1x8x128xf32>
    tpu.vector_store %arg4[%c0_83, %c0_84, %c0_85], %137 {strides = array<i32>} : memref<1x8x128xf32, #tpu.memory_space<vmem>>, vector<1x8x128xf32>,
    return
  }
  func.func @transform_1(%arg0: i32, %arg1: memref<16xi32, #tpu.memory_space<smem>>) -> (i32, i32, i32) {
    %c0_i32 = arith.constant 0 : i32
    %c0_i32_0 = arith.constant 0 : i32
    %c0_i32_1 = arith.constant 0 : i32
    return %arg0, %c0_i32, %c0_i32_0 : i32, i32, i32
  }
  func.func @transform_2(%arg0: i32, %arg1: memref<16xi32, #tpu.memory_space<smem>>) -> (i32, i32, i32) {
    %c0_i32 = arith.constant 0 : i32
    %c0_i32_0 = arith.constant 0 : i32
    %c0_i32_1 = arith.constant 0 : i32
    return %arg0, %c0_i32, %c0_i32_0 : i32, i32, i32
  }
}

</mosaic_0001>

<llo_original>
// kernel: tpu_custom_call.1
$region0: #{tpu_custom_call.1}
  #allocation0 [shape = 'u32[]', space=smem, size = 0x4, offset = 0x4, fixed_abs, tag = 'smem constant byte address 0x4 - core index']
  #allocation1 [shape = 'u32[72,128]{1,0:T(1,128)}', space=vmem, size = 0x9000, scoped, tag = 'internal scratch']
  #allocation2 [shape = 'f32[8,128]{1,0:T(8,128)}', space=vmem, size = 0x1000, scoped, tag = 'scratch operand']
  #allocation3 [shape = 's32[8]{0}', space=sflag, size = 0x20, scoped, tag = 'scratch operand']
  #allocation4 [shape = 's32[1]{0}', space=sflag, size = 0x4, scoped, tag = 'scoped memory for tpu_custom_call.1']
  #allocation5 [shape = 'u8[512]{0}', space=smem, size = 0x200, scoped, tag = 'prefetched SMEM operand 0']
  #allocation10 [shape = 's32[]', space=sflag, size = 0x4, offset = 0, fixed_abs, tag = 'sflag constant byte address 0x0 - dummy sync flag']
  #allocation11 [shape = 's32[]', space=sflag, size = 0x4, offset = 0, fixed_abs, tag = 'sflag constant byte address 0x0 - dummy sync flag']
  #allocation12 [shape = 'u32[]', space=smem, size = 0x4, offset = 0x44, fixed_abs, tag = 'smem constant byte address 0x44 - assertion arg 0']
  #allocation13 [shape = 'u32[]', space=smem, size = 0x4, offset = 0x48, fixed_abs, tag = 'smem constant byte address 0x48 - assertion arg 1']
  #allocation14 [shape = 's32[]', space=sflag, size = 0x4, offset = 0, fixed_abs, tag = 'sflag constant byte address 0x0 - dummy sync flag']
  #allocation15 [shape = 's32[]', space=sflag, size = 0x4, offset = 0, fixed_abs, tag = 'sflag constant byte address 0x0 - dummy sync flag']
  #allocation16 [shape = 's32[]', space=sflag, size = 0x4, offset = 0, fixed_abs, tag = 'sflag constant byte address 0x0 - dummy sync flag']
  #allocation17 [shape = 's32[]', space=sflag, size = 0x4, offset = 0, fixed_abs, tag = 'sflag constant byte address 0x0 - dummy sync flag']
  #allocation18 [shape = 's32[]', space=sflag, size = 0x4, offset = 0, fixed_abs, tag = 'sflag constant byte address 0x0 - dummy sync flag']
  #allocation19 [shape = 's32[]', space=sflag, size = 0x4, offset = 0, fixed_abs, tag = 'sflag constant byte address 0x0 - dummy sync flag']
  #allocation20 [shape = 's32[]', space=sflag, size = 0x4, offset = 0, fixed_abs, tag = 'sflag constant byte address 0x0 - dummy sync flag']
  #allocation21 [shape = 's32[]', space=sflag, size = 0x4, offset = 0, fixed_abs, tag = 'sflag constant byte address 0x0 - dummy sync flag']
  #allocation22 [shape = 's32[]', space=sflag, size = 0x4, offset = 0, fixed_abs, tag = 'sflag constant byte address 0x0 - dummy sync flag']
  #allocation23 [shape = 's32[]', space=sflag, size = 0x4, offset = 0, fixed_abs, tag = 'sflag constant byte address 0x0 - dummy sync flag']
  #allocation24 [shape = 's32[]', space=sflag, size = 0x4, offset = 0, fixed_abs, tag = 'sflag constant byte address 0x0 - dummy sync flag']
  #allocation25 [shape = 's32[]', space=sflag, size = 0x4, offset = 0, fixed_abs, tag = 'sflag constant byte address 0x0 - dummy sync flag']
  #allocation26 [shape = 's32[]', space=sflag, size = 0x4, offset = 0, fixed_abs, tag = 'sflag constant byte address 0x0 - dummy sync flag']
  #allocation27 [shape = 's32[]', space=sflag, size = 0x4, offset = 0, fixed_abs, tag = 'sflag constant byte address 0x0 - dummy sync flag']
  %s0 = inlined_call_operand.hbm [shape: s32[16], index: 0, kind: input, shape index: {}]
  %s1 = inlined_call_operand.hbm [shape: f32[128,128], index: 1, kind: input, shape index: {}]
  %s2 = inlined_call_operand.hbm [shape: f32[2,1,128], index: 2, kind: input, shape index: {}]
  %s3 = inlined_call_operand.hbm [shape: f32[2,8,128], index: 3, kind: output, shape index: {}]
  %s4 = sld [smem:[#allocation0]]
  $region73: #{tpu_custom_call.1} parent=0
    _
  %s6 = ssub.s32 1, %s4
  %s7 = scalar_select 0, %s6, %s4
  %s9 = sshll.u32 %s0, 4
  %s10 = int_to_ptr.hbm [resolvable:$true] %s9
  %12 = dma.hbm_to_smem %s10, 16, [#allocation5], [#allocation4]
  %14 = dma.done [#allocation4], 16
  %15 = sfence
  $region1: #{tpu_custom_call.1} parent=0
    #allocation6 [shape = 'u8[1024]{0}', space=vmem, size = 0x400, scoped, tag = 'input window, operand 2']
    #allocation7 [shape = 's32[2]{0}', space=sflag, size = 0x8, scoped, tag = 'scoped memory for tpu_custom_call.1']
    #allocation8 [shape = 's32[2]{0}', space=sflag, size = 0x8, scoped, tag = 'scoped memory for tpu_custom_call.1']
    #allocation9 [shape = 'u8[8192]{0}', space=vmem, size = 0x2000, scoped, tag = 'output window, operand 0']
    %16 = vsyncpa [#allocation7], 0
    %s17 = scalar_lea.sflag [#allocation7], 1
    %18 = vsyncpa %s17, 0
    %19 = vsyncpa [#allocation8], 0
    %s20 = scalar_lea.sflag [#allocation8], 1
    %21 = vsyncpa %s20, 0
    loop: start=0, step=1, limit=4
    $region2: #{tpu_custom_call.1} parent=1 // loop_pre_header
      _
    $region3: #{tpu_custom_call.1} parent=1 // loop_header
      %s23 = sphi 0, %s27
      %p24 = scmp.ge.s32.totalorder %s23, 4
      %s33 = sphi 0, %s35
      %s36 = sphi 0, %s33
      %s37 = sphi 0, %s36
      %s53 = sphi 0, %s37
      %s59 = sphi 0, %s61
      %s62 = sphi 0, %s59
      %s63 = sphi 0, %s62
      %s79 = sphi 0, %s63
    $region4: #{tpu_custom_call.1} parent=1 // loop_header_branch
      %26 = sbr.rel (%p24) target = $region8
    $region5: #{tpu_custom_call.1} parent=1 // loop_body
      %s28 = ssub.s32 %s23, 1
      %s29 = ssub.s32 %s23, 2
      %s30 = sadd.s32 %s23, 1
      %s31 = ssub.s32 %s23, %s30
      %p32 = scmp.eq.s32.totalorder %s31, 0
      %s34 = sadd.s32 %s33, 1
      %s35 = scalar_select %p32, %s33, %s34
      %p38 = pneg %p32
      %p39 = scmp.eq.s32.totalorder %s23, 1
      %p40 = por %p38, %p39
      %p41 = scmp.ne.s32.totalorder %s33, %s36
      %p42 = scmp.eq.s32.totalorder %s23, 0
      %p43 = por %p41, %p42
      %p44 = scmp.ne.s32.totalorder %s33, %s36
      %p45 = scmp.eq.s32.totalorder %s28, 1
      %p46 = por %p44, %p45
      %p47 = scmp.ne.s32.totalorder %s36, %s37
      %p48 = scmp.eq.s32.totalorder %s28, 0
      %p49 = por %p47, %p48
      %p50 = scmp.ne.s32.totalorder %s36, %s37
      %p51 = scmp.eq.s32.totalorder %s29, 1
      %p52 = por %p50, %p51
      %p54 = scmp.ne.s32.totalorder %s37, %s53
      %p55 = scmp.eq.s32.totalorder %s29, 0
      %p56 = por %p54, %p55
      %s57 = ssub.s32 %s23, %s30
      %p58 = scmp.eq.s32.totalorder %s57, 0
      %s60 = sadd.s32 %s59, 1
      %s61 = scalar_select %p58, %s59, %s60
      %p64 = pneg %p58
      %p65 = scmp.eq.s32.totalorder %s23, 1
      %p66 = por %p64, %p65
      %p67 = scmp.ne.s32.totalorder %s59, %s62
      %p68 = scmp.eq.s32.totalorder %s23, 0
      %p69 = por %p67, %p68
      %p70 = scmp.ne.s32.totalorder %s59, %s62
      %p71 = scmp.eq.s32.totalorder %s28, 1
      %p72 = por %p70, %p71
      %p73 = scmp.ne.s32.totalorder %s62, %s63
      %p74 = scmp.eq.s32.totalorder %s28, 0
      %p75 = por %p73, %p74
      %p76 = scmp.ne.s32.totalorder %s62, %s63
      %p77 = scmp.eq.s32.totalorder %s29, 1
      %p78 = por %p76, %p77
      %p80 = scmp.ne.s32.totalorder %s63, %s79
      %p81 = scmp.eq.s32.totalorder %s29, 0
      %p82 = por %p80, %p81
      %p83 = scmp.le.s32.totalorder 1, %s23
      %p84 = scmp.lt.s32.totalorder %s23, 3
      %p85 = pnand %p83, %p84
      %p86 = pneg %p85
      // Predicated region
      $region9: #{tpu_custom_call.1} parent=5 // pred_check
        _
      $region10: #{tpu_custom_call.1} parent=5 // pred_check_branch
        %88 = sbr.rel (%p85) target = $region12
      $region11: #{tpu_custom_call.1} parent=5 // pred_region
        %s89 = ssub.s32 %s23, 1
      $region12: #{tpu_custom_call.1} parent=5 // pred_fallthru
        _
      %p90 = scmp.lt.s32.totalorder %s23, 2
      // Predicated region
      $region13: #{tpu_custom_call.1} parent=5 // pred_check
        %p91 = pneg %p90
      $region14: #{tpu_custom_call.1} parent=5 // pred_check_branch
        %93 = sbr.rel (%p91) target = $region16
      $region15: #{tpu_custom_call.1} parent=5 // pred_region
        // Predicated region
        $region17: #{tpu_custom_call.1} parent=15 // pred_check
          %p94 = pneg %p43
        $region18: #{tpu_custom_call.1} parent=15 // pred_check_branch
          %96 = sbr.rel (%p94) target = $region20
        $region19: #{tpu_custom_call.1} parent=15 // pred_region
          %s97 = sand.u32 %s33, 1
          %s98 = scalar_lea.sflag [#allocation7], %s97
          %s99 = sand.u32 %s33, 1
          %s100 = scalar_lea.vmem [#allocation6], %s99
          %102 = vsyncadd %s98, 0
          %s103 = scalar_lea.hbm %s2, %s23
          %s105 = sshll.u32 %s103, 4
          %s106 = int_to_ptr.hbm [resolvable:$true] %s105
          %s107 = sshll.u32 %s100, 4
          %s108 = int_to_ptr.vmem [resolvable:$true] %s107
          %110 = dma.hbm_to_vmem [thread:$0]  %s106, 16, %s108, %s98
        $region20: #{tpu_custom_call.1} parent=15 // pred_fallthru
          _
      $region16: #{tpu_custom_call.1} parent=5 // pred_fallthru
        _
      %p111 = scmp.le.s32.totalorder 1, %s23
      %p112 = scmp.lt.s32.totalorder %s23, 3
      %p113 = pnand %p111, %p112
      %p114 = pneg %p113
      // Predicated region
      $region21: #{tpu_custom_call.1} parent=5 // pred_check
        _
      $region22: #{tpu_custom_call.1} parent=5 // pred_check_branch
        %116 = sbr.rel (%p113) target = $region24
      $region23: #{tpu_custom_call.1} parent=5 // pred_region
        %s117 = ssub.s32 %s23, 1
        %s118 = sand.u32 %s36, 1
        %s119 = scalar_lea.sflag [#allocation7], %s118
        %s120 = sand.u32 %s36, 1
        %s121 = scalar_lea.vmem [#allocation6], %s120
        // Predicated region
        $region25: #{tpu_custom_call.1} parent=23 // pred_check
          %p122 = pneg %p49
        $region26: #{tpu_custom_call.1} parent=23 // pred_check_branch
          %124 = sbr.rel (%p122) target = $region28
        $region27: #{tpu_custom_call.1} parent=23 // pred_region
          %126 = dma.done %s119, 16
        $region28: #{tpu_custom_call.1} parent=23 // pred_fallthru
          _
        %s127 = sand.u32 %s36, 1
        %s128 = scalar_lea.sflag [#allocation7], %s127
        %s129 = sand.u32 %s36, 1
        %s130 = scalar_lea.vmem [#allocation6], %s129
        %p131 = pneg %p49
        %p132 = pneg %p46
        %p133 = pneg %p75
        %p134 = pneg %p72
        %s135 = sand.u32 %s62, 1
        %s136 = scalar_lea.sflag [#allocation8], %s135
        %s137 = sand.u32 %s62, 1
        %s138 = smul.addr %s137, 8
        %s139 = scalar_lea.vmem [#allocation9], %s138
        %s140 = smul.u32 %s28, 8
        %s141 = sld [smem:[#allocation5 + %s140]]
        %s142 = scalar_lea.hbm %s1, %s141
        // Predicated region
        $region29: #{tpu_custom_call.1} parent=23 // pred_check
          _
        $region30: #{tpu_custom_call.1} parent=23 // pred_check_branch
          %144 = sbr.rel target = $region32
        $region31: #{tpu_custom_call.1} parent=23 // pred_region
          %145 = sst [smem:[#allocation12]] [#allocation11]
          %146 = sst [smem:[#allocation13]] [#allocation10]
        $region32: #{tpu_custom_call.1} parent=23 // pred_fallthru
          _
        %148 = shalt.err (0)
        %s150 = sshll.u32 %s142, 4
        %s151 = int_to_ptr.hbm [resolvable:$true] %s150
        %s152 = sshll.u32 [#allocation2], 4
        %s153 = int_to_ptr.vmem [resolvable:$true] %s152
        %155 = dma.hbm_to_vmem [thread:$0]  %s151, 16, %s153, [#allocation3]
        %s156 = sadd.s32 %s140, 1
        %s157 = sld [smem:[#allocation5 + %s156]]
        %s158 = scalar_lea.hbm %s1, %s157
        %s159 = scalar_lea.vmem [#allocation2], 1
        %s160 = scalar_lea.sflag [#allocation3], 1
        // Predicated region
        $region33: #{tpu_custom_call.1} parent=23 // pred_check
          _
        $region34: #{tpu_custom_call.1} parent=23 // pred_check_branch
          %162 = sbr.rel target = $region36
        $region35: #{tpu_custom_call.1} parent=23 // pred_region
          %163 = sst [smem:[#allocation12]] [#allocation15]
          %164 = sst [smem:[#allocation13]] [#allocation14]
        $region36: #{tpu_custom_call.1} parent=23 // pred_fallthru
          _
        %166 = shalt.err (0)
        %s168 = sshll.u32 %s158, 4
        %s169 = int_to_ptr.hbm [resolvable:$true] %s168
        %s170 = sshll.u32 %s159, 4
        %s171 = int_to_ptr.vmem [resolvable:$true] %s170
        %173 = dma.hbm_to_vmem [thread:$0]  %s169, 16, %s171, %s160
        %s174 = sadd.s32 %s140, 2
        %s175 = sld [smem:[#allocation5 + %s174]]
        %s176 = scalar_lea.hbm %s1, %s175
        %s177 = scalar_lea.vmem [#allocation2], 2
        %s178 = scalar_lea.sflag [#allocation3], 2
        // Predicated region
        $region37: #{tpu_custom_call.1} parent=23 // pred_check
          _
        $region38: #{tpu_custom_call.1} parent=23 // pred_check_branch
          %180 = sbr.rel target = $region40
        $region39: #{tpu_custom_call.1} parent=23 // pred_region
          %181 = sst [smem:[#allocation12]] [#allocation17]
          %182 = sst [smem:[#allocation13]] [#allocation16]
        $region40: #{tpu_custom_call.1} parent=23 // pred_fallthru
          _
        %184 = shalt.err (0)
        %s186 = sshll.u32 %s176, 4
        %s187 = int_to_ptr.hbm [resolvable:$true] %s186
        %s188 = sshll.u32 %s177, 4
        %s189 = int_to_ptr.vmem [resolvable:$true] %s188
        %191 = dma.hbm_to_vmem [thread:$0]  %s187, 16, %s189, %s178
        %s192 = sadd.s32 %s140, 3
        %s193 = sld [smem:[#allocation5 + %s192]]
        %s194 = scalar_lea.hbm %s1, %s193
        %s195 = scalar_lea.vmem [#allocation2], 3
        %s196 = scalar_lea.sflag [#allocation3], 3
        // Predicated region
        $region41: #{tpu_custom_call.1} parent=23 // pred_check
          _
        $region42: #{tpu_custom_call.1} parent=23 // pred_check_branch
          %198 = sbr.rel target = $region44
        $region43: #{tpu_custom_call.1} parent=23 // pred_region
          %199 = sst [smem:[#allocation12]] [#allocation19]
          %200 = sst [smem:[#allocation13]] [#allocation18]
        $region44: #{tpu_custom_call.1} parent=23 // pred_fallthru
          _
        %202 = shalt.err (0)
        %s204 = sshll.u32 %s194, 4
        %s205 = int_to_ptr.hbm [resolvable:$true] %s204
        %s206 = sshll.u32 %s195, 4
        %s207 = int_to_ptr.vmem [resolvable:$true] %s206
        %209 = dma.hbm_to_vmem [thread:$0]  %s205, 16, %s207, %s196
        %s210 = sadd.s32 %s140, 4
        %s211 = sld [smem:[#allocation5 + %s210]]
        %s212 = scalar_lea.hbm %s1, %s211
        %s213 = scalar_lea.vmem [#allocation2], 4
        %s214 = scalar_lea.sflag [#allocation3], 4
        // Predicated region
        $region45: #{tpu_custom_call.1} parent=23 // pred_check
          _
        $region46: #{tpu_custom_call.1} parent=23 // pred_check_branch
          %216 = sbr.rel target = $region48
        $region47: #{tpu_custom_call.1} parent=23 // pred_region
          %217 = sst [smem:[#allocation12]] [#allocation21]
          %218 = sst [smem:[#allocation13]] [#allocation20]
        $region48: #{tpu_custom_call.1} parent=23 // pred_fallthru
          _
        %220 = shalt.err (0)
        %s222 = sshll.u32 %s212, 4
        %s223 = int_to_ptr.hbm [resolvable:$true] %s222
        %s224 = sshll.u32 %s213, 4
        %s225 = int_to_ptr.vmem [resolvable:$true] %s224
        %227 = dma.hbm_to_vmem [thread:$0]  %s223, 16, %s225, %s214
        %s228 = sadd.s32 %s140, 5
        %s229 = sld [smem:[#allocation5 + %s228]]
        %s230 = scalar_lea.hbm %s1, %s229
        %s231 = scalar_lea.vmem [#allocation2], 5
        %s232 = scalar_lea.sflag [#allocation3], 5
        // Predicated region
        $region49: #{tpu_custom_call.1} parent=23 // pred_check
          _
        $region50: #{tpu_custom_call.1} parent=23 // pred_check_branch
          %234 = sbr.rel target = $region52
        $region51: #{tpu_custom_call.1} parent=23 // pred_region
          %235 = sst [smem:[#allocation12]] [#allocation23]
          %236 = sst [smem:[#allocation13]] [#allocation22]
        $region52: #{tpu_custom_call.1} parent=23 // pred_fallthru
          _
        %238 = shalt.err (0)
        %s240 = sshll.u32 %s230, 4
        %s241 = int_to_ptr.hbm [resolvable:$true] %s240
        %s242 = sshll.u32 %s231, 4
        %s243 = int_to_ptr.vmem [resolvable:$true] %s242
        %245 = dma.hbm_to_vmem [thread:$0]  %s241, 16, %s243, %s232
        %s246 = sadd.s32 %s140, 6
        %s247 = sld [smem:[#allocation5 + %s246]]
        %s248 = scalar_lea.hbm %s1, %s247
        %s249 = scalar_lea.vmem [#allocation2], 6
        %s250 = scalar_lea.sflag [#allocation3], 6
        // Predicated region
        $region53: #{tpu_custom_call.1} parent=23 // pred_check
          _
        $region54: #{tpu_custom_call.1} parent=23 // pred_check_branch
          %252 = sbr.rel target = $region56
        $region55: #{tpu_custom_call.1} parent=23 // pred_region
          %253 = sst [smem:[#allocation12]] [#allocation25]
          %254 = sst [smem:[#allocation13]] [#allocation24]
        $region56: #{tpu_custom_call.1} parent=23 // pred_fallthru
          _
        %256 = shalt.err (0)
        %s258 = sshll.u32 %s248, 4
        %s259 = int_to_ptr.hbm [resolvable:$true] %s258
        %s260 = sshll.u32 %s249, 4
        %s261 = int_to_ptr.vmem [resolvable:$true] %s260
        %263 = dma.hbm_to_vmem [thread:$0]  %s259, 16, %s261, %s250
        %s264 = sadd.s32 %s140, 7
        %s265 = sld [smem:[#allocation5 + %s264]]
        %s266 = scalar_lea.hbm %s1, %s265
        %s267 = scalar_lea.vmem [#allocation2], 7
        %s268 = scalar_lea.sflag [#allocation3], 7
        // Predicated region
        $region57: #{tpu_custom_call.1} parent=23 // pred_check
          _
        $region58: #{tpu_custom_call.1} parent=23 // pred_check_branch
          %270 = sbr.rel target = $region60
        $region59: #{tpu_custom_call.1} parent=23 // pred_region
          %271 = sst [smem:[#allocation12]] [#allocation27]
          %272 = sst [smem:[#allocation13]] [#allocation26]
        $region60: #{tpu_custom_call.1} parent=23 // pred_fallthru
          _
        %274 = shalt.err (0)
        %s276 = sshll.u32 %s266, 4
        %s277 = int_to_ptr.hbm [resolvable:$true] %s276
        %s278 = sshll.u32 %s267, 4
        %s279 = int_to_ptr.vmem [resolvable:$true] %s278
        %281 = dma.hbm_to_vmem [thread:$0]  %s277, 16, %s279, %s268
        %283 = dma.done [#allocation3], 16
        %285 = dma.done %s160, 16
        %287 = dma.done %s178, 16
        %289 = dma.done %s196, 16
        %291 = dma.done %s214, 16
        %293 = dma.done %s232, 16
        %295 = dma.done %s250, 16
        %297 = dma.done %s268, 16
        %v298 = vld [vmem:[#allocation2] sm:$0xff]
        %v299 = vmul.f32 %v298, 11.313708
        %v300 = vld [vmem:[%s121] sm:$0x1]
        %v302 = vperm.slane %v300, 0
        %v304 = vadd.f32 %v299, %v302
        %305 = vst [vmem:[%s139] sm:$0xff] %v304
        %s306 = sand.u32 %s62, 1
        %s307 = scalar_lea.sflag [#allocation8], %s306
        %s308 = sand.u32 %s62, 1
        %s309 = smul.addr %s308, 8
        %s310 = scalar_lea.vmem [#allocation9], %s309
        // Predicated region
        $region61: #{tpu_custom_call.1} parent=23 // pred_check
          %p311 = pneg %p72
        $region62: #{tpu_custom_call.1} parent=23 // pred_check_branch
          %313 = sbr.rel (%p311) target = $region64
        $region63: #{tpu_custom_call.1} parent=23 // pred_region
          %315 = vsyncadd %s307, 0
          %s316 = smul.addr %s28, 8
          %s317 = scalar_lea.hbm %s3, %s316
          %s319 = sshll.u32 %s310, 4
          %s320 = int_to_ptr.vmem [resolvable:$true] %s319
          %s321 = sshll.u32 %s317, 4
          %s322 = int_to_ptr.hbm [resolvable:$true] %s321
          %324 = dma.vmem_to_hbm [thread:$0]  %s320, 128, %s322, %s307
        $region64: #{tpu_custom_call.1} parent=23 // pred_fallthru
          _
      $region24: #{tpu_custom_call.1} parent=5 // pred_fallthru
        _
      %p325 = scmp.le.s32.totalorder 2, %s23
      // Predicated region
      $region65: #{tpu_custom_call.1} parent=5 // pred_check
        %p326 = pneg %p325
      $region66: #{tpu_custom_call.1} parent=5 // pred_check_branch
        %328 = sbr.rel (%p326) target = $region68
      $region67: #{tpu_custom_call.1} parent=5 // pred_region
        %s329 = ssub.s32 %s23, 2
        // Predicated region
        $region69: #{tpu_custom_call.1} parent=67 // pred_check
          %p330 = pneg %p78
        $region70: #{tpu_custom_call.1} parent=67 // pred_check_branch
          %332 = sbr.rel (%p330) target = $region72
        $region71: #{tpu_custom_call.1} parent=67 // pred_region
          %s333 = sand.u32 %s63, 1
          %s334 = scalar_lea.sflag [#allocation8], %s333
          %s335 = sand.u32 %s63, 1
          %s336 = smul.addr %s335, 8
          %s337 = scalar_lea.vmem [#allocation9], %s336
          %339 = dma.done %s334, 128
        $region72: #{tpu_custom_call.1} parent=67 // pred_fallthru
          _
      $region68: #{tpu_custom_call.1} parent=5 // pred_fallthru
        _
    $region6: #{tpu_custom_call.1} parent=1 // loop_footer
      %s27 = sadd.s32 1, %s23
    $region7: #{tpu_custom_call.1} parent=1 // loop_footer_branch
      %22 = sbr.rel target = $region3
    $region8: #{tpu_custom_call.1} parent=1 // loop_exit
      _
    %340 = vsyncpa [#allocation7], 1
    %s341 = scalar_lea.sflag [#allocation7], 1
    %342 = vsyncpa %s341, 1
    %343 = vsyncpa [#allocation8], 1
    %s344 = scalar_lea.sflag [#allocation8], 1
    %345 = vsyncpa %s344, 1
  %346 = vsyncmov [#allocation3]
  %s347 = vpop.sfrf %346
  %p348 = scmp.eq.s32.totalorder %s347, 0
  %p349 = pneg %p348
  %351 = shalt.err (%p349)
  %s352 = scalar_lea.sflag [#allocation3], 1
  %353 = vsyncmov %s352
  %s354 = vpop.sfrf %353
  %p355 = scmp.eq.s32.totalorder %s354, 0
  %p356 = pneg %p355
  %358 = shalt.err (%p356)
  %s359 = scalar_lea.sflag [#allocation3], 2
  %360 = vsyncmov %s359
  %s361 = vpop.sfrf %360
  %p362 = scmp.eq.s32.totalorder %s361, 0
  %p363 = pneg %p362
  %365 = shalt.err (%p363)
  %s366 = scalar_lea.sflag [#allocation3], 3
  %367 = vsyncmov %s366
  %s368 = vpop.sfrf %367
  %p369 = scmp.eq.s32.totalorder %s368, 0
  %p370 = pneg %p369
  %372 = shalt.err (%p370)
  %s373 = scalar_lea.sflag [#allocation3], 4
  %374 = vsyncmov %s373
  %s375 = vpop.sfrf %374
  %p376 = scmp.eq.s32.totalorder %s375, 0
  %p377 = pneg %p376
  %379 = shalt.err (%p377)
  %s380 = scalar_lea.sflag [#allocation3], 5
  %381 = vsyncmov %s380
  %s382 = vpop.sfrf %381
  %p383 = scmp.eq.s32.totalorder %s382, 0
  %p384 = pneg %p383
  %386 = shalt.err (%p384)
  %s387 = scalar_lea.sflag [#allocation3], 6
  %388 = vsyncmov %s387
  %s389 = vpop.sfrf %388
  %p390 = scmp.eq.s32.totalorder %s389, 0
  %p391 = pneg %p390
  %393 = shalt.err (%p391)
  %s394 = scalar_lea.sflag [#allocation3], 7
  %395 = vsyncmov %s394
  %s396 = vpop.sfrf %395
  %p397 = scmp.eq.s32.totalorder %s396, 0
  %p398 = pneg %p397
  %400 = shalt.err (%p398)

</llo_original>
